<compile_context>
chip_gen: v6e
topology: v6e:2x2x1
jax: 0.10.0
libtpu: 0.0.40
codegen_flags: <defaults>
</compile_context>

<pallas_src>
import functools

import jax
import jax.numpy as jnp
from jax import lax
from jax.experimental import pallas as pl
from jax.experimental.pallas import tpu as pltpu


def _round_up(a, b):
    return ((a + b - 1) // b) * b


def _vmem_capacity_bytes():
    """Physical VMEM per core; conservative 64 MiB fallback (v7x size)."""
    try:
        info = pltpu.get_tpu_info()
        for name in ("vmem_capacity_bytes", "vmem_bytes", "vmem_size_bytes"):
            v = getattr(info, name, None)
            if v:
                return int(v)
    except Exception:
        pass
    return 64 << 20


def _pick_fold(bc, hw):
    """Channels folded per kernel row so the store lane axis is >= 128 wide."""
    if hw >= 128 or bc <= 1:
        return 1
    best = 1
    for m in range(2, bc + 1):
        if m > 16 or m * hw > 2048:
            break
        if bc % m:
            continue
        best = m
        if m * hw >= 128:
            break
    return best


def _pick_tile_rows(g, row_bytes_f32, sub, target_tile_bytes):
    """Rows per tile: VMEM-budgeted, sublane-aligned, megacore-friendly."""
    budget = max(sub, (target_tile_bytes // max(1, row_bytes_f32)) // sub * sub)
    if budget >= g:
        # Single block covers every row.  Split for megacore + pipelining only
        # when there is enough total work to amortize the per-step overhead.
        if g >= 8 * sub and g * row_bytes_f32 >= (8 << 20):
            return max(sub, _round_up(pl.cdiv(g, 8), sub))
        return g
    steps = pl.cdiv(g, budget)
    if steps < 4:
        # Aim for ~8 steps (>= 4 per TensorCore on v7x) but keep each tile
        # >= ~1 MiB so the ~0.35us per-step overhead stays negligible.
        floor_rows = max(sub, ((1 << 20) // max(1, row_bytes_f32)) // sub * sub)
        want = max(floor_rows, _round_up(pl.cdiv(g, 8), sub))
        budget = max(sub, min(budget, want))
    return budget


# --------------------------------------------------------------------------
# Single-pass kernel: whole spatial row (possibly m folded channels) resident.
# --------------------------------------------------------------------------
def _simam_kernel(x_ref, o_ref, *, hw, m, inv_n, e_lambda):
    x = x_ref[...].astype(jnp.float32)
    inv_hw = 1.0 / hw
    if m == 1:
        mu = jnp.sum(x, axis=-1, keepdims=True) * inv_hw
        d = x - mu
        d2 = d * d
        s = jnp.sum(d2, axis=-1, keepdims=True)
        inv = 1.0 / (4.0 * (s * inv_n + e_lambda))      # per-row divide only
        y = d2 * inv + 0.5
    else:
        # m channels folded into the lane axis; segmented reduction via lane
        # masks (VPU/XLU have slack, no cross-lane relayout needed).
        seg = lax.broadcasted_iota(jnp.int32, x.shape, 1) // hw
        mu = jnp.zeros_like(x)
        for k in range(m):
            msk = seg == k
            mk = jnp.sum(jnp.where(msk, x, 0.0), axis=-1, keepdims=True) * inv_hw
            mu = jnp.where(msk, mk, mu)
        d = x - mu
        d2 = d * d
        inv = jnp.zeros_like(x)
        for k in range(m):
            msk = seg == k
            sk = jnp.sum(jnp.where(msk, d2, 0.0), axis=-1, keepdims=True)
            inv = jnp.where(msk, 1.0 / (4.0 * (sk * inv_n + e_lambda)), inv)
        y = d2 * inv + 0.5
    # NOTE: on v7x a bf16 epilogue + EUP approx reciprocal could shave VPU
    # slots, but f32 keeps parity with the PyTorch reference on all chips.
    o_ref[...] = (x * jax.nn.sigmoid(y)).astype(o_ref.dtype)


# --------------------------------------------------------------------------
# Two-pass streaming fallback for very large H*W (spatial row > VMEM budget).
# Pass 1: per-row sum / sum-of-squares accumulated across H*W tiles.
# Pass 2: re-read x and apply the elementwise energy + sigmoid gate.
# --------------------------------------------------------------------------
def _stats_kernel(x_ref, sum_ref, sq_ref, *, hw, tile_hw):
    j = pl.program_id(1)

    @pl.when(j == 0)
    def _():
        sum_ref[...] = jnp.zeros_like(sum_ref)
        sq_ref[...] = jnp.zeros_like(sq_ref)

    x = x_ref[...].astype(jnp.float32)
    if hw % tile_hw:  # ragged last H*W tile: mask out-of-range lanes exactly
        col = j * tile_hw + lax.broadcasted_iota(jnp.int32, x.shape, 1)
        x = jnp.where(col < hw, x, 0.0)
    sum_ref[...] += jnp.sum(x, axis=-1, keepdims=True)
    sq_ref[...] += jnp.sum(x * x, axis=-1, keepdims=True)


def _apply_kernel(sum_ref, sq_ref, x_ref, o_ref, *, hw, inv_n, e_lambda):
    x = x_ref[...].astype(jnp.float32)
    sx = sum_ref[...]
    mu = sx * (1.0 / hw)
    # Streaming variance (sumsq - sum*mu); clamp against rounding.
    s = jnp.maximum(sq_ref[...] - sx * mu, 0.0)
    inv = 1.0 / (4.0 * (s * inv_n + e_lambda))
    d = x - mu
    y = d * d * inv + 0.5
    o_ref[...] = (x * jax.nn.sigmoid(y)).astype(o_ref.dtype)


def simam(x, e_lambda=0.0001, *, _force_two_pass=False,
          _force_tile_rows=None, _force_tile_hw=None):
    """SimAM forward. x: (B, C, H, W) NCHW array."""
    b, c, h, w = x.shape
    hw = h * w
    bc = b * c
    n = float(hw - 1)
    inv_n = (1.0 / n) if n > 0.0 else float("inf")  # hw==1 -> NaN, like PyTorch
    dtype = x.dtype
    itemsize = jnp.dtype(dtype).itemsize
    sub = max(8, 32 // itemsize)  # dtype-native sublane tile: 8 f32 / 16 bf16 / 32 i8

    capacity = _vmem_capacity_bytes()
    vmem_limit = int(max(32 << 20, capacity - (16 << 20)))
    # ~1/16 of VMEM per f32 working tile leaves room for the double-buffered
    # in/out tiles plus f32 temporaries on every generation (v5e/v6e/v7x).
    target_tile_bytes = int(min(8 << 20, capacity // 16))

    x2d = x.reshape(bc, hw)

    # Single-pass needs one full spatial row (min row tile, double-buffered
    # in/out plus f32 temps) to fit comfortably in VMEM.
    min_need = sub * hw * (4 * itemsize + 6 * 4)
    two_pass = _force_two_pass or (min_need > capacity // 2)

    if not two_pass:
        # Lane-dense folding for small feature maps (hw < 128).
        m = _pick_fold(bc, hw)
        g = bc // m
        L = m * hw
        xf = x2d.reshape(g, L) if m > 1 else x2d  # contiguous -> free reshape
        tile_rows = _pick_tile_rows(g, L * 4, sub, target_tile_bytes)
        if _force_tile_rows is not None:
            tile_rows = int(_force_tile_rows)
        grid = (pl.cdiv(g, tile_rows),)

        kernel = functools.partial(_simam_kernel, hw=hw, m=m,
                                   inv_n=inv_n, e_lambda=float(e_lambda))
        out = pl.pallas_call(
            kernel,
            out_shape=jax.ShapeDtypeStruct((g, L), dtype),
            grid_spec=pltpu.PrefetchScalarGridSpec(
                num_scalar_prefetch=0,
                grid=grid,
                in_specs=[pl.BlockSpec((tile_rows, L), lambda i: (i, 0))],
                out_specs=pl.BlockSpec((tile_rows, L), lambda i: (i, 0)),
            ),
            compiler_params=pltpu.CompilerParams(
                dimension_semantics=("parallel",),
                vmem_limit_bytes=vmem_limit,
            ),
        )(xf)
        return out.reshape(b, c, h, w)

    # ---------------- two-pass streaming fallback ----------------
    tile_rows = int(_force_tile_rows) if _force_tile_rows else sub
    if _force_tile_hw is not None:
        tile_hw = int(_force_tile_hw)
    else:
        tile_hw = max(128, (target_tile_bytes // (tile_rows * 4)) // 128 * 128)
        tile_hw = min(tile_hw, _round_up(hw, 128))
    grid = (pl.cdiv(bc, tile_rows), pl.cdiv(hw, tile_hw))

    xsum, xsq = pl.pallas_call(
        functools.partial(_stats_kernel, hw=hw, tile_hw=tile_hw),
        out_shape=(jax.ShapeDtypeStruct((bc, 1), jnp.float32),
                   jax.ShapeDtypeStruct((bc, 1), jnp.float32)),
        grid_spec=pltpu.PrefetchScalarGridSpec(
            num_scalar_prefetch=0,
            grid=grid,
            in_specs=[pl.BlockSpec((tile_rows, tile_hw), lambda i, j: (i, j))],
            out_specs=[pl.BlockSpec((tile_rows, 1), lambda i, j: (i, 0)),
                       pl.BlockSpec((tile_rows, 1), lambda i, j: (i, 0))],
        ),
        compiler_params=pltpu.CompilerParams(
            dimension_semantics=("parallel", "arbitrary"),
            vmem_limit_bytes=vmem_limit,
        ),
    )(x2d)

    out2d = pl.pallas_call(
        functools.partial(_apply_kernel, hw=hw, inv_n=inv_n,
                          e_lambda=float(e_lambda)),
        out_shape=jax.ShapeDtypeStruct((bc, hw), dtype),
        grid_spec=pltpu.PrefetchScalarGridSpec(
            num_scalar_prefetch=0,
            grid=grid,
            in_specs=[pl.BlockSpec((tile_rows, 1), lambda i, j: (i, 0)),
                      pl.BlockSpec((tile_rows, 1), lambda i, j: (i, 0)),
                      pl.BlockSpec((tile_rows, tile_hw), lambda i, j: (i, j))],
            out_specs=pl.BlockSpec((tile_rows, tile_hw), lambda i, j: (i, j)),
        ),
        compiler_params=pltpu.CompilerParams(
            dimension_semantics=("parallel", "parallel"),
            vmem_limit_bytes=vmem_limit,
        ),
    )(xsum, xsq, x2d)
    return out2d.reshape(b, c, h, w)


def simam_reference(x, e_lambda=0.0001):
    """Pure-JAX reference matching the PyTorch forward exactly."""
    b, c, h, w = x.shape
    n = w * h - 1
    mu = jnp.mean(x, axis=(2, 3), keepdims=True)
    d2 = (x - mu) ** 2
    y = d2 / (4.0 * (jnp.sum(d2, axis=(2, 3), keepdims=True) / n + e_lambda)) + 0.5
    return x * jax.nn.sigmoid(y)


if __name__ == "__main__":
    # Main check: hw = 256 >= 128, single-pass lane-dense path.
    B, C, H, W = 2, 4, 16, 16
    x = jax.random.normal(jax.random.PRNGKey(0), (B, C, H, W), dtype=jnp.float32)
    out = jax.block_until_ready(simam(x, e_lambda=0.0001))
    ref = simam_reference(x, e_lambda=0.0001)
    assert out.shape == (B, C, H, W)
    assert jnp.allclose(out, ref, atol=1e-5, rtol=1e-5), "mismatch (single-pass)"

    # hw = 64 < 128 with B*C = 3: exercises the lane-dense channel folding
    # (m = 3 segments per kernel row) and non-multiple-of-8 row count.
    x2 = jax.random.normal(jax.random.PRNGKey(1), (1, 3, 8, 8), dtype=jnp.float32)
    out2 = jax.block_until_ready(simam(x2, e_lambda=0.0001))
    ref2 = simam_reference(x2, e_lambda=0.0001)
    assert jnp.allclose(out2, ref2, atol=1e-5, rtol=1e-5), "mismatch (folded path)"

    # Force the two-pass streaming fallback on a small shape so the huge-H*W
    # guard path (ragged rows + ragged/masked hw tiles) is also exercised.
    x3 = jax.random.normal(jax.random.PRNGKey(2), (1, 5, 10, 20), dtype=jnp.float32)
    out3 = jax.block_until_ready(
        simam(x3, e_lambda=0.0001, _force_two_pass=True,
              _force_tile_rows=8, _force_tile_hw=128))
    ref3 = simam_reference(x3, e_lambda=0.0001)
    assert jnp.allclose(out3, ref3, atol=1e-5, rtol=1e-5), "mismatch (two-pass path)"

    print("KERNEL_OK")
</pallas_src>

<mosaic_0001>
module attributes {stable_mosaic.version = 11 : i64} {
  func.func @_simam_kernel(%arg0: i32, %arg1: memref<8x256xf32, #tpu.memory_space<vmem>>, %arg2: memref<8x256xf32, #tpu.memory_space<vmem>>) attributes {dimension_semantics = [#tpu.dimension_semantics<parallel>], iteration_bounds = array<i64: 1>, scalar_prefetch = 0 : i64, scratch_operands = 0 : i64, tpu.core_type = #tpu.core_type<tc>, window_params = [{transform_indices = @transform_0, window_bounds = array<i64: 8, 256>}, {transform_indices = @transform_1, window_bounds = array<i64: 8, 256>}]} {
    %c0 = arith.constant 0 : index
    %c0_0 = arith.constant 0 : index
    %0 = vector.load %arg1[%c0, %c0_0] : memref<8x256xf32, #tpu.memory_space<vmem>>, vector<8x256xf32>
    %cst = arith.constant dense<0.000000e+00> : vector<8xf32>
    %1 = vector.multi_reduction <add>, %0, %cst [1] : vector<8x256xf32> to vector<8xf32>
    %2 = vector.shape_cast %1 : vector<8xf32> to vector<8x1xf32>
    %cst_1 = arith.constant 3.906250e-03 : f32
    %3 = vector.broadcast %cst_1 : f32 to vector<8x1xf32>
    %4 = arith.mulf %2, %3 : vector<8x1xf32>
    %5 = vector.broadcast %4 : vector<8x1xf32> to vector<8x256xf32>
    %6 = arith.subf %0, %5 : vector<8x256xf32>
    %7 = arith.mulf %6, %6 : vector<8x256xf32>
    %cst_2 = arith.constant dense<0.000000e+00> : vector<8xf32>
    %8 = vector.multi_reduction <add>, %7, %cst_2 [1] : vector<8x256xf32> to vector<8xf32>
    %9 = vector.shape_cast %8 : vector<8xf32> to vector<8x1xf32>
    %cst_3 = arith.constant 0.00392156886 : f32
    %10 = vector.broadcast %cst_3 : f32 to vector<8x1xf32>
    %11 = arith.mulf %9, %10 : vector<8x1xf32>
    %cst_4 = arith.constant 9.99999974E-5 : f32
    %12 = vector.broadcast %cst_4 : f32 to vector<8x1xf32>
    %13 = arith.addf %11, %12 : vector<8x1xf32>
    %cst_5 = arith.constant 4.000000e+00 : f32
    %14 = vector.broadcast %cst_5 : f32 to vector<8x1xf32>
    %15 = arith.mulf %14, %13 : vector<8x1xf32>
    %cst_6 = arith.constant 1.000000e+00 : f32
    %16 = vector.broadcast %cst_6 : f32 to vector<8x1xf32>
    %17 = arith.divf %16, %15 : vector<8x1xf32>
    %18 = vector.broadcast %17 : vector<8x1xf32> to vector<8x256xf32>
    %19 = arith.mulf %7, %18 : vector<8x256xf32>
    %cst_7 = arith.constant 5.000000e-01 : f32
    %20 = vector.broadcast %cst_7 : f32 to vector<8x256xf32>
    %21 = arith.addf %19, %20 : vector<8x256xf32>
    %22 = arith.negf %21 : vector<8x256xf32>
    %23 = math.exp %22 : vector<8x256xf32>
    %cst_8 = arith.constant 1.000000e+00 : f32
    %24 = vector.broadcast %cst_8 : f32 to vector<8x256xf32>
    %25 = arith.addf %24, %23 : vector<8x256xf32>
    %26 = arith.divf %24, %25 : vector<8x256xf32>
    %27 = arith.mulf %0, %26 : vector<8x256xf32>
    %c0_9 = arith.constant 0 : index
    %c0_10 = arith.constant 0 : index
    %28 = vector.load %arg2[%c0_9, %c0_10] : memref<8x256xf32, #tpu.memory_space<vmem>>, vector<8x256xf32>
    tpu.vector_store %arg2[%c0_9, %c0_10], %27 {strides = array<i32>} : memref<8x256xf32, #tpu.memory_space<vmem>>, vector<8x256xf32>,
    return
  }
  func.func @transform_0(%arg0: i32) -> (i32, i32) {
    %c0_i32 = arith.constant 0 : i32
    %c0_i32_0 = arith.constant 0 : i32
    return %arg0, %c0_i32 : i32, i32
  }
  func.func @transform_1(%arg0: i32) -> (i32, i32) {
    %c0_i32 = arith.constant 0 : i32
    %c0_i32_0 = arith.constant 0 : i32
    return %arg0, %c0_i32 : i32, i32
  }
}

</mosaic_0001>

<llo_original>
// kernel: tpu_custom_call.1
$region0: #{tpu_custom_call.1}
  #allocation0 [shape = 'u32[]', space=smem, size = 0x4, offset = 0x4, fixed_abs, tag = 'smem constant byte address 0x4 - core index']
  #allocation1 [shape = 'u32[144,128]{1,0:T(1,128)}', space=vmem, size = 0x12000, scoped, tag = 'internal scratch']
  %s0 = inlined_call_operand.hbm [shape: f32[8,256], index: 0, kind: input, shape index: {}]
  %s1 = inlined_call_operand.hbm [shape: f32[8,256], index: 1, kind: output, shape index: {}]
  %s2 = sld [smem:[#allocation0]]
  $region18: #{tpu_custom_call.1} parent=0
    _
  %s4 = ssub.s32 1, %s2
  %s5 = scalar_select 0, %s4, %s2
  $region1: #{tpu_custom_call.1} parent=0
    #allocation2 [shape = 'u8[8192]{0}', space=vmem, size = 0x2000, scoped, tag = 'input window, operand 0, single buffered']
    #allocation3 [shape = 's32[1]{0}', space=sflag, size = 0x4, scoped, tag = 'scoped memory for tpu_custom_call.1']
    #allocation4 [shape = 's32[1]{0}', space=sflag, size = 0x4, scoped, tag = 'scoped memory for tpu_custom_call.1']
    #allocation5 [shape = 'u8[8192]{0}', space=vmem, size = 0x2000, scoped, tag = 'output window, operand 0, single buffered']
    %6 = vsyncpa [#allocation3], 0
    %7 = vsyncpa [#allocation4], 0
    // Predicated region
    $region2: #{tpu_custom_call.1} parent=1 // pred_check
      _
    $region3: #{tpu_custom_call.1} parent=1 // pred_check_branch
      %9 = sbr.rel (0) target = $region5
    $region4: #{tpu_custom_call.1} parent=1 // pred_region
      %s11 = ssub.s32 256, 256
      %12 = vsyncadd [#allocation3], %s11
      %s14 = sshll.u32 [#allocation2], 4
      %s15 = int_to_ptr.vmem [resolvable:$true] %s14
      %17 = dma.hbm_to_vmem [thread:$0]  %s0, 256, %s15, [#allocation3]
    $region5: #{tpu_custom_call.1} parent=1 // pred_fallthru
      _
    // Predicated region
    $region6: #{tpu_custom_call.1} parent=1 // pred_check
      _
    $region7: #{tpu_custom_call.1} parent=1 // pred_check_branch
      %19 = sbr.rel (0) target = $region9
    $region8: #{tpu_custom_call.1} parent=1 // pred_region
      %20 = dma.done [#allocation3], 256
    $region9: #{tpu_custom_call.1} parent=1 // pred_fallthru
      _
    %v21 = vld [vmem:[#allocation2] sm:$0xff]
    %v22 = vld [vmem:[#allocation2 + $0x8] sm:$0xff]
    %v23 = vadd.f32 %v21, %v22
    %24 = vadd.xlane.f32.xlu0 %v23
    %v25 = vpop.xlane.xlu0 %24
    %v26 = vmul.f32 %v25, 0.00390625
    %v27 = vsub.f32 %v21, %v26
    %v28 = vsub.f32 %v22, %v26
    %v29 = vmul.f32 %v27, %v27
    %v30 = vmul.f32 %v28, %v28
    %v31 = vadd.f32 %v29, %v30
    %32 = vadd.xlane.f32.xlu0 %v31
    %v33 = vpop.xlane.xlu0 %32
    %v34 = vmul.f32 %v33, 0.003921569
    %v35 = vadd.f32 %v34, 0.0001
    %v36 = vmul.f32 %v35, 4.0
    %v37 = vrcp.pop %v36
    %v38 = vmul.f32 1.0, %v37
    %v39 = vmul.f32 %v29, %v38
    %v40 = vmul.f32 %v30, %v38
    %v41 = vadd.f32 %v39, 0.5
    %v42 = vadd.f32 %v40, 0.5
    %v43 = vxor.u32 %v41, 2147483648
    %v44 = vxor.u32 %v42, 2147483648
    %v45 = vmul.f32 %v43, 1.442695
    %v46 = vpow.pop %v45
    %v47 = vmul.f32 %v44, 1.442695
    %v48 = vpow.pop %v47
    %v49 = vadd.f32 %v46, 1.0
    %v50 = vadd.f32 %v48, 1.0
    %v51 = vrcp.pop %v49
    %v52 = vmul.f32 1.0, %v51
    %v53 = vrcp.pop %v50
    %v54 = vmul.f32 1.0, %v53
    %v55 = vmul.f32 %v21, %v52
    %v56 = vmul.f32 %v22, %v54
    %57 = vst [vmem:[#allocation5] sm:$0xff] %v55
    %58 = vst [vmem:[#allocation5 + $0x8] sm:$0xff] %v56
    // Predicated region
    $region10: #{tpu_custom_call.1} parent=1 // pred_check
      _
    $region11: #{tpu_custom_call.1} parent=1 // pred_check_branch
      %60 = sbr.rel (0) target = $region13
    $region12: #{tpu_custom_call.1} parent=1 // pred_region
      %s62 = ssub.s32 256, 256
      %63 = vsyncadd [#allocation4], %s62
      %s65 = sshll.u32 [#allocation5], 4
      %s66 = int_to_ptr.vmem [resolvable:$true] %s65
      %68 = dma.vmem_to_hbm [thread:$0]  %s66, 256, %s1, [#allocation4]
    $region13: #{tpu_custom_call.1} parent=1 // pred_fallthru
      _
    // Predicated region
    $region14: #{tpu_custom_call.1} parent=1 // pred_check
      _
    $region15: #{tpu_custom_call.1} parent=1 // pred_check_branch
      %70 = sbr.rel (0) target = $region17
    $region16: #{tpu_custom_call.1} parent=1 // pred_region
      %71 = dma.done [#allocation4], 256
    $region17: #{tpu_custom_call.1} parent=1 // pred_fallthru
      _
    %72 = vsyncpa [#allocation3], 1
    %73 = vsyncpa [#allocation4], 1

</llo_original>
